<compile_context>
chip_gen: v6e
topology: v6e:2x2x1
jax: 0.10.0
libtpu: 0.0.40
codegen_flags: <defaults>
</compile_context>

<pallas_src>
import functools

import jax
import jax.numpy as jnp
from jax.experimental import pallas as pl
from jax.experimental.pallas import tpu as pltpu  # noqa: F401  (TPU backend)


# ----------------------------------------------------------------------------
# Fused Pallas kernel: conv-matmul + BatchNorm(train) + LeakyReLU
# ----------------------------------------------------------------------------
def _fused_conv_bn_lrelu_kernel(w_ref, p_ref, gb_ref, o_ref, *,
                                eps, neg_slope, inv_m):
    # w_ref: (Cout, Kf) bf16   p_ref: (Kf, M) bf16
    # gb_ref: (Cout, 2) f32  [gamma | beta]   o_ref: (Cout, M)  (lane-dense M)
    acc = jnp.dot(w_ref[...], p_ref[...],
                  preferred_element_type=jnp.float32)          # (Cout, M) f32

    # Single-pass per-channel batch stats (reduce over lanes = over N*OH*OW).
    s1 = jnp.sum(acc, axis=1, keepdims=True)                   # (Cout, 1)
    s2 = jnp.sum(acc * acc, axis=1, keepdims=True)             # (Cout, 1)
    mean = s1 * inv_m
    var = jnp.maximum(s2 * inv_m - mean * mean, 0.0)           # clamp cancellation

    gamma = gb_ref[:, 0:1]                                     # (Cout, 1)
    beta = gb_ref[:, 1:2]                                      # (Cout, 1)

    # Fold BN into per-channel scale/shift -> one FMA per element; rsqrt on EUP.
    scale = gamma * jax.lax.rsqrt(var + eps)
    shift = beta - mean * scale
    y = acc * scale + shift

    # LeakyReLU(0.2): max(y, 0.2*y) — one VPU max instead of cmp+select.
    o_ref[...] = jnp.maximum(y, neg_slope * y).astype(o_ref.dtype)


def _fused_conv_bn_lrelu(w_mat, pat_t, gamma_beta, *, eps, neg_slope,
                         out_dtype=jnp.float32):
    cout, kf = w_mat.shape
    _, m = pat_t.shape
    kernel = functools.partial(_fused_conv_bn_lrelu_kernel,
                               eps=eps, neg_slope=neg_slope, inv_m=1.0 / m)
    return pl.pallas_call(
        kernel,
        out_shape=jax.ShapeDtypeStruct((cout, m), out_dtype),
        in_specs=[
            pl.BlockSpec((cout, kf), lambda: (0, 0)),   # spectral-normed weight
            pl.BlockSpec((kf, m), lambda: (0, 0)),      # patches^T
            pl.BlockSpec((cout, 2), lambda: (0, 0)),    # merged gamma/beta
        ],
        out_specs=pl.BlockSpec((cout, m), lambda: (0, 0)),
    )(w_mat, pat_t, gamma_beta)


# ----------------------------------------------------------------------------
# Wrapper glue (plain JAX): slim transposed im2col, spectral norm, NCHW iface
# ----------------------------------------------------------------------------
def _im2col_T(x, kh, kw, stride, padding):
    # x: (N, C, H, W) -> patches^T (C*kh*kw, N*OH*OW)
    # k-order = (c, i, j) to match weight.reshape(Cout, Cin*KH*KW);
    # M-order = (n, oh, ow).
    n, c, h, w = x.shape
    oh = (h + 2 * padding - kh) // stride + 1
    ow = (w + 2 * padding - kw) // stride + 1
    # Transpose the SMALL input once (channel-major) so no transpose of the
    # 9x-expanded patch tensor is needed afterwards.
    xc = jnp.transpose(x, (1, 0, 2, 3))                       # (C, N, H, W)
    xp = jnp.pad(xc, ((0, 0), (0, 0), (padding, padding), (padding, padding)))
    slabs = [xp[:, :, i:i + stride * oh:stride, j:j + stride * ow:stride]
             for i in range(kh) for j in range(kw)]           # each (C,N,OH,OW)
    pat = jnp.stack(slabs, axis=1)                            # (C, kh*kw, N, OH, OW)
    return pat.reshape(c * kh * kw, n * oh * ow), oh, ow


def _spectral_norm_weight(w, key, n_iters=1, eps=1e-12):
    # w: (Cout, Cin, KH, KW); one power-iteration step like torch spectral_norm.
    # TODO(synk): torch persists the u/v power-iteration buffers across steps;
    #   here a fresh u is drawn each call (stateless forward).
    cout = w.shape[0]
    w_mat = w.reshape(cout, -1)
    u = jax.random.normal(key, (cout,), dtype=jnp.float32)
    u = u / (jnp.linalg.norm(u) + eps)
    v = jnp.zeros((w_mat.shape[1],), jnp.float32)
    for _ in range(n_iters):
        v = w_mat.T @ u
        v = v / (jnp.linalg.norm(v) + eps)
        u = w_mat @ v
        u = u / (jnp.linalg.norm(u) + eps)
    sigma = u @ (w_mat @ v)
    return w / sigma


def conv_block_forward(x, weight, gamma, beta, *, stride, padding,
                       eps=1e-5, neg_slope=0.2, use_bf16=True,
                       out_dtype=jnp.float32, channel_major_out=False):
    """x: NCHW float32; weight: (Cout, Cin, KH, KW).

    Default returns NCHW float32 (matches the torch module).  For chained
    Conv_blocks set out_dtype=jnp.bfloat16, channel_major_out=True to skip the
    relayout + f32 writeback and hand the next block a bf16 (Cout, N*OH*OW) slab.
    """
    cout, cin, kh, kw = weight.shape
    n = x.shape[0]
    cdt = jnp.bfloat16 if use_bf16 else jnp.float32

    # Cast the small activation tensor ONCE, before the 9x im2col expansion.
    pat_t, oh, ow = _im2col_T(x.astype(cdt), kh, kw, stride, padding)  # (Kf, M)
    w_mat = weight.reshape(cout, cin * kh * kw).astype(cdt)            # (Cout, Kf)
    gamma_beta = jnp.stack(
        [gamma.astype(jnp.float32), beta.astype(jnp.float32)], axis=-1)  # (Cout, 2)

    out_rows = _fused_conv_bn_lrelu(w_mat, pat_t, gamma_beta,
                                    eps=eps, neg_slope=neg_slope,
                                    out_dtype=out_dtype)               # (Cout, M)
    if channel_major_out:
        return out_rows, (n, oh, ow)

    y = out_rows.reshape(cout, n, oh, ow)
    return jnp.transpose(y, (1, 0, 2, 3)).astype(jnp.float32)          # NCHW f32


# ----------------------------------------------------------------------------
# Reference (plain JAX) for sanity check
# ----------------------------------------------------------------------------
def conv_block_reference(x, weight, gamma, beta, *, stride, padding,
                         eps=1e-5, neg_slope=0.2):
    conv = jax.lax.conv_general_dilated(
        x, weight, window_strides=(stride, stride),
        padding=((padding, padding), (padding, padding)),
        dimension_numbers=("NCHW", "OIHW", "NCHW"))
    mean = jnp.mean(conv, axis=(0, 2, 3), keepdims=True)
    var = jnp.mean((conv - mean) ** 2, axis=(0, 2, 3), keepdims=True)
    y = (conv - mean) * jax.lax.rsqrt(var + eps)
    y = y * gamma.reshape(1, -1, 1, 1) + beta.reshape(1, -1, 1, 1)
    return jnp.where(y >= 0, y, neg_slope * y)


if __name__ == "__main__":
    # Module config: Conv_block(in_ch=4, out_ch=8, kernel_size=3, stride=1,
    #                           padding=1, bias=False, norm=True)
    in_ch, out_ch, ksize, stride, padding = 4, 8, 3, 1, 1
    N, H, W = 2, 16, 16

    key = jax.random.PRNGKey(0)
    kx, kw_, ku = jax.random.split(key, 3)

    x = jax.random.normal(kx, (N, in_ch, H, W), dtype=jnp.float32)
    w_raw = jax.random.normal(kw_, (out_ch, in_ch, ksize, ksize),
                              dtype=jnp.float32) * 0.1
    w_sn = _spectral_norm_weight(w_raw, ku, n_iters=1)   # spectral-normalized
    gamma = jnp.ones((out_ch,), jnp.float32)             # BatchNorm2d defaults
    beta = jnp.zeros((out_ch,), jnp.float32)

    # Default path: f32, NCHW (matches torch module semantics).
    out = conv_block_forward(x, w_sn, gamma, beta, stride=stride, padding=padding)
    out = jax.block_until_ready(out)
    assert out.shape == (N, out_ch, H, W)

    # The kernel feeds the MXU bf16 operands (f32 accumulation), so compare
    # against a reference computed on identically bf16-quantized operands.
    x_q = x.astype(jnp.bfloat16).astype(jnp.float32)
    w_q = w_sn.astype(jnp.bfloat16).astype(jnp.float32)
    ref = conv_block_reference(x_q, w_q, gamma, beta,
                               stride=stride, padding=padding)
    max_err = jnp.max(jnp.abs(out - ref))
    assert jnp.allclose(out, ref, atol=1e-4, rtol=1e-4), f"max err {max_err}"

    # Chained-block path: bf16, channel-major output (no relayout / f32 writeback).
    out_cm, (n_, oh_, ow_) = conv_block_forward(
        x, w_sn, gamma, beta, stride=stride, padding=padding,
        out_dtype=jnp.bfloat16, channel_major_out=True)
    out_cm = jax.block_until_ready(out_cm)
    assert out_cm.shape == (out_ch, N * H * W) and out_cm.dtype == jnp.bfloat16
    out_cm_nchw = jnp.transpose(
        out_cm.astype(jnp.float32).reshape(out_ch, n_, oh_, ow_), (1, 0, 2, 3))
    max_err_cm = jnp.max(jnp.abs(out_cm_nchw - ref))
    assert max_err_cm < 5e-2, f"bf16 channel-major max err {max_err_cm}"

    print("KERNEL_OK")
</pallas_src>

<mosaic_0001>
module attributes {stable_mosaic.version = 11 : i64} {
  func.func @_fused_conv_bn_lrelu_kernel(%arg0: memref<8x36xbf16, #tpu.memory_space<vmem>>, %arg1: memref<36x512xbf16, #tpu.memory_space<vmem>>, %arg2: memref<8x2xf32, #tpu.memory_space<vmem>>, %arg3: memref<8x512xf32, #tpu.memory_space<vmem>>) attributes {dimension_semantics = [], scalar_prefetch = 0 : i64, scratch_operands = 0 : i64, tpu.core_type = #tpu.core_type<tc>} {
    %c0 = arith.constant 0 : index
    %c0_0 = arith.constant 0 : index
    %0 = vector.load %arg0[%c0, %c0_0] : memref<8x36xbf16, #tpu.memory_space<vmem>>, vector<8x36xbf16>
    %c0_1 = arith.constant 0 : index
    %c0_2 = arith.constant 0 : index
    %1 = vector.load %arg1[%c0_1, %c0_2] : memref<36x512xbf16, #tpu.memory_space<vmem>>, vector<36x512xbf16>
    %cst = arith.constant dense<0.000000e+00> : vector<8x512xf32>
    %2 = tpu.matmul %0, %1, %cst {dimension_numbers = #tpu.dot_dimension_numbers<[1], [0], [0], [1], [0, 0, 1, 1], [], []>} : vector<8x36xbf16>, vector<36x512xbf16>, vector<8x512xf32> -> vector<8x512xf32>
    %cst_3 = arith.constant dense<0.000000e+00> : vector<8xf32>
    %3 = vector.multi_reduction <add>, %2, %cst_3 [1] : vector<8x512xf32> to vector<8xf32>
    %4 = vector.shape_cast %3 : vector<8xf32> to vector<8x1xf32>
    %5 = arith.mulf %2, %2 : vector<8x512xf32>
    %cst_4 = arith.constant dense<0.000000e+00> : vector<8xf32>
    %6 = vector.multi_reduction <add>, %5, %cst_4 [1] : vector<8x512xf32> to vector<8xf32>
    %7 = vector.shape_cast %6 : vector<8xf32> to vector<8x1xf32>
    %cst_5 = arith.constant 0.001953125 : f32
    %8 = vector.broadcast %cst_5 : f32 to vector<8x1xf32>
    %9 = arith.mulf %4, %8 : vector<8x1xf32>
    %cst_6 = arith.constant 0.001953125 : f32
    %10 = vector.broadcast %cst_6 : f32 to vector<8x1xf32>
    %11 = arith.mulf %7, %10 : vector<8x1xf32>
    %12 = arith.mulf %9, %9 : vector<8x1xf32>
    %13 = arith.subf %11, %12 : vector<8x1xf32>
    %cst_7 = arith.constant 0.000000e+00 : f32
    %14 = vector.broadcast %cst_7 : f32 to vector<8x1xf32>
    %15 = arith.maximumf %13, %14 : vector<8x1xf32>
    %c0_8 = arith.constant 0 : index
    %c0_9 = arith.constant 0 : index
    %16 = vector.load %arg2[%c0_8, %c0_9] : memref<8x2xf32, #tpu.memory_space<vmem>>, vector<8x1xf32>
    %c0_10 = arith.constant 0 : index
    %c1 = arith.constant 1 : index
    %17 = vector.load %arg2[%c0_10, %c1] : memref<8x2xf32, #tpu.memory_space<vmem>>, vector<8x1xf32>
    %cst_11 = arith.constant 9.99999974E-6 : f32
    %18 = vector.broadcast %cst_11 : f32 to vector<8x1xf32>
    %19 = arith.addf %15, %18 : vector<8x1xf32>
    %20 = math.rsqrt %19 : vector<8x1xf32>
    %21 = arith.mulf %16, %20 : vector<8x1xf32>
    %22 = arith.mulf %9, %21 : vector<8x1xf32>
    %23 = arith.subf %17, %22 : vector<8x1xf32>
    %24 = vector.broadcast %21 : vector<8x1xf32> to vector<8x512xf32>
    %25 = arith.mulf %2, %24 : vector<8x512xf32>
    %26 = vector.broadcast %23 : vector<8x1xf32> to vector<8x512xf32>
    %27 = arith.addf %25, %26 : vector<8x512xf32>
    %cst_12 = arith.constant 2.000000e-01 : f32
    %28 = vector.broadcast %cst_12 : f32 to vector<8x512xf32>
    %29 = arith.mulf %28, %27 : vector<8x512xf32>
    %30 = arith.maximumf %27, %29 : vector<8x512xf32>
    %c0_13 = arith.constant 0 : index
    %c0_14 = arith.constant 0 : index
    %31 = vector.load %arg3[%c0_13, %c0_14] : memref<8x512xf32, #tpu.memory_space<vmem>>, vector<8x512xf32>
    tpu.vector_store %arg3[%c0_13, %c0_14], %30 {strides = array<i32>} : memref<8x512xf32, #tpu.memory_space<vmem>>, vector<8x512xf32>,
    return
  }
}

</mosaic_0001>

<llo_original>
// kernel: tpu_custom_call.1
$region0: #{tpu_custom_call.1}
  #allocation0 [shape = 'u32[]', space=smem, size = 0x4, offset = 0x4, fixed_abs, tag = 'smem constant byte address 0x4 - core index']
  #allocation1 [shape = 'u32[144,128]{1,0:T(1,128)}', space=vmem, size = 0x12000, scoped, tag = 'internal scratch']
  %s0 = inlined_call_operand.vmem [shape: bf16[8,36], index: 0, kind: input, shape index: {}]
  %s1 = inlined_call_operand.hbm [shape: bf16[36,512], index: 1, kind: input, shape index: {}]
  %s2 = inlined_call_operand.vmem [shape: f32[8,2], index: 2, kind: input, shape index: {}]
  %s3 = inlined_call_operand.hbm [shape: f32[8,512], index: 3, kind: output, shape index: {}]
  %s4 = sld [smem:[#allocation0]]
  $region26: #{tpu_custom_call.1} parent=0
    _
  %s6 = ssub.s32 1, %s4
  %s7 = scalar_select 0, %s6, %s4
  $region1: #{tpu_custom_call.1} parent=0
    #allocation2 [shape = 'u8[40960]{0}', space=vmem, size = 0xa000, scoped, tag = 'input window, operand 1, single buffered']
    #allocation3 [shape = 's32[1]{0}', space=sflag, size = 0x4, scoped, tag = 'scoped memory for tpu_custom_call.1']
    #allocation4 [shape = 's32[1]{0}', space=sflag, size = 0x4, scoped, tag = 'scoped memory for tpu_custom_call.1']
    #allocation5 [shape = 'u8[16384]{0}', space=vmem, size = 0x4000, scoped, tag = 'output window, operand 0, single buffered']
    %8 = vsyncpa [#allocation3], 0
    %9 = vsyncpa [#allocation4], 0
    // Predicated region
    $region2: #{tpu_custom_call.1} parent=1 // pred_check
      _
    $region3: #{tpu_custom_call.1} parent=1 // pred_check_branch
      %11 = sbr.rel (0) target = $region5
    $region4: #{tpu_custom_call.1} parent=1 // pred_region
      _
    $region5: #{tpu_custom_call.1} parent=1 // pred_fallthru
      _
    // Predicated region
    $region6: #{tpu_custom_call.1} parent=1 // pred_check
      _
    $region7: #{tpu_custom_call.1} parent=1 // pred_check_branch
      %13 = sbr.rel (0) target = $region9
    $region8: #{tpu_custom_call.1} parent=1 // pred_region
      %s15 = ssub.s32 1280, 1280
      %16 = vsyncadd [#allocation3], %s15
      %s17 = sshll.u32 [#allocation2], 4
      %s18 = int_to_ptr.vmem [resolvable:$true] %s17
      %23 = dma.hbm_to_vmem [thread:$0]  %s1, 1280, %s18, [#allocation3], 256, 256, 16
    $region9: #{tpu_custom_call.1} parent=1 // pred_fallthru
      _
    // Predicated region
    $region10: #{tpu_custom_call.1} parent=1 // pred_check
      _
    $region11: #{tpu_custom_call.1} parent=1 // pred_check_branch
      %25 = sbr.rel (0) target = $region13
    $region12: #{tpu_custom_call.1} parent=1 // pred_region
      _
    $region13: #{tpu_custom_call.1} parent=1 // pred_fallthru
      _
    // Predicated region
    $region14: #{tpu_custom_call.1} parent=1 // pred_check
      _
    $region15: #{tpu_custom_call.1} parent=1 // pred_check_branch
      %27 = sbr.rel (0) target = $region17
    $region16: #{tpu_custom_call.1} parent=1 // pred_region
      %28 = dma.done [#allocation3], 1280
    $region17: #{tpu_custom_call.1} parent=1 // pred_fallthru
      _
    %v30 = vld [vmem:[%s0] sm:$0xf]
    %v31 = vld [vmem:[#allocation2] sm:$0xff]
    %v32 = vld [vmem:[#allocation2 + $0x8] sm:$0xff]
    %v33 = vld [vmem:[#allocation2 + $0x10] sm:$0xff]
    %v34 = vld [vmem:[#allocation2 + $0x18] sm:$0xff]
    %v35 = vld [vmem:[#allocation2 + $0x20] sm:$0xff]
    %v36 = vld [vmem:[#allocation2 + $0x28] sm:$0xff]
    %v37 = vld [vmem:[#allocation2 + $0x30] sm:$0xff]
    %v38 = vld [vmem:[#allocation2 + $0x38] sm:$0xff]
    %v39 = vld [vmem:[#allocation2 + $0x40] sm:$0x33]
    %v40 = vld [vmem:[#allocation2 + $0x48] sm:$0x33]
    %v51 = vunpack.c.l.b16 %v31
    %v52 = vunpack.c.h.b16 %v31
    %v53 = vunpack.c.l.b16 %v32
    %v54 = vunpack.c.h.b16 %v32
    %v55 = vunpack.c.l.b16 %v33
    %v56 = vunpack.c.h.b16 %v33
    %v57 = vunpack.c.l.b16 %v34
    %v58 = vunpack.c.h.b16 %v34
    %v59 = vunpack.c.l.b16 %v35
    %v60 = vunpack.c.h.b16 %v35
    %v61 = vunpack.c.l.b16 %v36
    %v62 = vunpack.c.h.b16 %v36
    %v63 = vunpack.c.l.b16 %v37
    %v64 = vunpack.c.h.b16 %v37
    %v65 = vunpack.c.l.b16 %v38
    %v66 = vunpack.c.h.b16 %v38
    %v67 = vunpack.c.l.b16 %v39
    %v68 = vunpack.c.h.b16 %v39
    %v69 = vunpack.c.l.b16 %v40
    %v70 = vunpack.c.h.b16 %v40
    %v71 = vpack.c.b16 %v55, %v51
    %v72 = vpack.c.b16 %v56, %v52
    %v73 = vpack.c.b16 %v57, %v53
    %v74 = vpack.c.b16 %v58, %v54
    %v75 = vpack.c.b16 %v63, %v59
    %v76 = vpack.c.b16 %v64, %v60
    %v77 = vpack.c.b16 %v65, %v61
    %v78 = vpack.c.b16 %v66, %v62
    %v79 = vpack.c.b16 %v67, %v67
    %v80 = vpack.c.b16 %v68, %v68
    %v81 = vpack.c.b16 %v69, %v69
    %v82 = vpack.c.b16 %v70, %v70
    %vm91 = vcmask 293888
    %v93 = vsel %vm91, %v30, 0
    %vm95 = vcmask 1041408
    %v97 = vsel %vm95, %v79, 0
    %v100 = vsel %vm95, %v80, 0
    %v103 = vsel %vm95, %v81, 0
    %v106 = vsel %vm95, %v82, 0
    %108 = vmatprep.subr.bf16.mxu0 0
    %109 = vmatpush1.bf16.msra.mxu0 0
    %110 = vmatprep.subr.bf16.mxu0 0
    %111 = vmatpush1.bf16.msra.mxu0 0
    %112 = vmatprep.subr.bf16.mxu0 0
    %113 = vmatpush1.bf16.msra.mxu0 0
    %114 = vmatprep.subr.bf16.mxu0 0
    %115 = vmatpush1.bf16.msra.mxu0 0
    %116 = vmatprep.subr.bf16.mxu0 0
    %117 = vmatpush1.bf16.msra.mxu0 0
    %118 = vmatprep.subr.bf16.mxu0 %v100
    %119 = vmatpush1.bf16.msra.mxu0 %v97
    %120 = vmatprep.subr.bf16.mxu0 %v76
    %121 = vmatpush1.bf16.msra.mxu0 %v75
    %122 = vmatprep.subr.bf16.mxu0 %v72
    %123 = vmatpush1.bf16.msra.mxu0 %v71
    %124 = vmatprep.subr.bf16.mxu0 0
    %125 = vmatpush2.bf16.msra.mxu0 0
    %126 = vmatprep.subr.bf16.mxu0 0
    %127 = vmatpush2.bf16.msra.mxu0 0
    %128 = vmatprep.subr.bf16.mxu0 0
    %129 = vmatpush2.bf16.msra.mxu0 0
    %130 = vmatprep.subr.bf16.mxu0 0
    %131 = vmatpush2.bf16.msra.mxu0 0
    %132 = vmatprep.subr.bf16.mxu0 0
    %133 = vmatpush2.bf16.msra.mxu0 0
    %134 = vmatprep.subr.bf16.mxu0 0
    %135 = vmatpush2.bf16.msra.mxu0 0
    %136 = vmatprep.subr.bf16.mxu0 0
    %137 = vmatpush2.bf16.msra.mxu0 0
    %138 = vmatprep.subr.bf16.mxu0 0
    %139 = vmatpush2.bf16.msra.mxu0 0
    %140 = vmatprep.mubr.bf16.mxu0 0
    %141 = vmatmul.mubr.bf16.gmra.mxu0 %v93
    %v142 = vpop.f32.mrf.mxu0
    %v143 = vadd.f32 0.0, %v142
    %v144 = vpop.f32.mrf.mxu0
    %v145 = vadd.f32 0.0, %v144
    %v146 = vpop.f32.mrf.mxu0
    %v147 = vpop.f32.mrf.mxu0
    %148 = vdwg.mxu0
    %149 = vmatprep.subr.bf16.mxu0 0
    %150 = vmatpush1.bf16.msra.mxu0 0
    %151 = vmatprep.subr.bf16.mxu0 0
    %152 = vmatpush1.bf16.msra.mxu0 0
    %153 = vmatprep.subr.bf16.mxu0 0
    %154 = vmatpush1.bf16.msra.mxu0 0
    %155 = vmatprep.subr.bf16.mxu0 0
    %156 = vmatpush1.bf16.msra.mxu0 0
    %157 = vmatprep.subr.bf16.mxu0 0
    %158 = vmatpush1.bf16.msra.mxu0 0
    %159 = vmatprep.subr.bf16.mxu0 %v106
    %160 = vmatpush1.bf16.msra.mxu0 %v103
    %161 = vmatprep.subr.bf16.mxu0 %v78
    %162 = vmatpush1.bf16.msra.mxu0 %v77
    %163 = vmatprep.subr.bf16.mxu0 %v74
    %164 = vmatpush1.bf16.msra.mxu0 %v73
    %165 = vmatprep.subr.bf16.mxu0 0
    %166 = vmatpush2.bf16.msra.mxu0 0
    %167 = vmatprep.subr.bf16.mxu0 0
    %168 = vmatpush2.bf16.msra.mxu0 0
    %169 = vmatprep.subr.bf16.mxu0 0
    %170 = vmatpush2.bf16.msra.mxu0 0
    %171 = vmatprep.subr.bf16.mxu0 0
    %172 = vmatpush2.bf16.msra.mxu0 0
    %173 = vmatprep.subr.bf16.mxu0 0
    %174 = vmatpush2.bf16.msra.mxu0 0
    %175 = vmatprep.subr.bf16.mxu0 0
    %176 = vmatpush2.bf16.msra.mxu0 0
    %177 = vmatprep.subr.bf16.mxu0 0
    %178 = vmatpush2.bf16.msra.mxu0 0
    %179 = vmatprep.subr.bf16.mxu0 0
    %180 = vmatpush2.bf16.msra.mxu0 0
    %181 = vmatprep.mubr.bf16.mxu0 0
    %182 = vmatmul.mubr.bf16.gmra.mxu0 %v93
    %v183 = vpop.f32.mrf.mxu0
    %v184 = vadd.f32 0.0, %v183
    %v185 = vpop.f32.mrf.mxu0
    %v186 = vadd.f32 0.0, %v185
    %v187 = vpop.f32.mrf.mxu0
    %v188 = vpop.f32.mrf.mxu0
    %189 = vdwg.mxu0
    %v190 = vadd.f32 %v143, %v145
    %v191 = vadd.f32 %v190, %v184
    %v192 = vadd.f32 %v191, %v186
    %193 = vadd.xlane.f32.xlu0 %v192
    %v194 = vpop.xlane.xlu0 %193
    %v195 = vmul.f32 %v143, %v143
    %v196 = vmul.f32 %v145, %v145
    %v197 = vmul.f32 %v184, %v184
    %v198 = vmul.f32 %v186, %v186
    %v199 = vadd.f32 %v195, %v196
    %v200 = vadd.f32 %v199, %v197
    %v201 = vadd.f32 %v200, %v198
    %202 = vadd.xlane.f32.xlu0 %v201
    %v203 = vpop.xlane.xlu0 %202
    %v204 = vmul.f32 %v194, 0.001953125
    %v205 = vmul.f32 %v203, 0.001953125
    %v206 = vmul.f32 %v204, %v204
    %v207 = vsub.f32 %v205, %v206
    %v208 = vmax.f32 %v207, 0.0
    %v209 = vld [vmem:[%s2] sm:$0xff]
    %v210 = vadd.f32 %v208, 1e-05
    %v211 = vrsqrt.pop %v210
    %v212 = vmul.f32 %v209, %v211
    %v213 = vmul.f32 %v204, %v212
    %215 = vrot.lane.b32.xlu0 %v213, 1
    %v216 = vpop.permute.xlu0 %215
    %v218 = vsub.f32 %v209, %v216
    %220 = vset.pattern.permute.xlu0 0
    %221 = vperm.xlu0 %220, %v212
    %v222 = vpop.permute.xlu0 %221
    %v224 = vmul.f32 %v143, %v222
    %v225 = vmul.f32 %v145, %v222
    %v226 = vmul.f32 %v184, %v222
    %v227 = vmul.f32 %v186, %v222
    %229 = vset.pattern.permute.xlu0 1
    %230 = vperm.xlu0 %229, %v218
    %v231 = vpop.permute.xlu0 %230
    %v233 = vadd.f32 %v224, %v231
    %v234 = vadd.f32 %v225, %v231
    %v235 = vadd.f32 %v226, %v231
    %v236 = vadd.f32 %v227, %v231
    %v237 = vmul.f32 %v233, 0.2
    %v238 = vmul.f32 %v234, 0.2
    %v239 = vmul.f32 %v235, 0.2
    %v240 = vmul.f32 %v236, 0.2
    %v241 = vmax.f32 %v233, %v237
    %v242 = vmax.f32 %v234, %v238
    %v243 = vmax.f32 %v235, %v239
    %v244 = vmax.f32 %v236, %v240
    %245 = vst [vmem:[#allocation5] sm:$0xff] %v241
    %246 = vst [vmem:[#allocation5 + $0x8] sm:$0xff] %v242
    %247 = vst [vmem:[#allocation5 + $0x10] sm:$0xff] %v243
    %248 = vst [vmem:[#allocation5 + $0x18] sm:$0xff] %v244
    // Predicated region
    $region18: #{tpu_custom_call.1} parent=1 // pred_check
      _
    $region19: #{tpu_custom_call.1} parent=1 // pred_check_branch
      %250 = sbr.rel (0) target = $region21
    $region20: #{tpu_custom_call.1} parent=1 // pred_region
      %s252 = ssub.s32 512, 512
      %253 = vsyncadd [#allocation4], %s252
      %s255 = sshll.u32 [#allocation5], 4
      %s256 = int_to_ptr.vmem [resolvable:$true] %s255
      %258 = dma.vmem_to_hbm [thread:$0]  %s256, 512, %s3, [#allocation4]
    $region21: #{tpu_custom_call.1} parent=1 // pred_fallthru
      _
    // Predicated region
    $region22: #{tpu_custom_call.1} parent=1 // pred_check
      _
    $region23: #{tpu_custom_call.1} parent=1 // pred_check_branch
      %260 = sbr.rel (0) target = $region25
    $region24: #{tpu_custom_call.1} parent=1 // pred_region
      %261 = dma.done [#allocation4], 512
    $region25: #{tpu_custom_call.1} parent=1 // pred_fallthru
      _
    %262 = vsyncpa [#allocation3], 1
    %263 = vsyncpa [#allocation4], 1

</llo_original>
